<compile_context>
chip_gen: v6e
topology: v6e:2x2x1
jax: 0.10.0
libtpu: 0.0.40
codegen_flags: <defaults>
</compile_context>

<pallas_src>
import jax
import jax.numpy as jnp
from jax.experimental import pallas as pl
from jax.experimental.pallas import tpu as pltpu

_LANE = 128
_TARGET_BLOCK_BYTES = 2 * 1024 * 1024   # per buffer; ~4x when double-buffered
_SMALL_THRESHOLD = 8 * _LANE            # below ~1 vreg: skip the kernel launch


def _cdiv(a, b):
    return -(-a // b)


def _round_up(a, b):
    return _cdiv(a, b) * b


def _sublane_multiple(dtype):
    # Packing multiple for the second-minor dim: 8 for 32-bit, 16 for 16-bit,
    # 32 for 8-bit dtypes (always a multiple of the (8,128) hard constraint).
    return max(8, 32 // jnp.dtype(dtype).itemsize)


def _prelu_kernel(alpha_ref, x_ref, o_ref):
    # alpha_ref: (1,) f32 scalar in SMEM; x_ref/o_ref: (block_rows, lane_w) VMEM tiles.
    x = x_ref[...]
    a = alpha_ref[0].astype(x.dtype)      # keep compare/mul/select in x's dtype
    o_ref[...] = jnp.where(x >= 0, x, a * x)


def _prelu_pallas_flat(xf, alpha32):
    """PReLU on a flat, lane-aligned (size % 128 == 0) 1-D array via Pallas."""
    n = xf.size
    dtype = xf.dtype
    itemsize = jnp.dtype(dtype).itemsize
    sub = _sublane_multiple(dtype)

    # Widest lane dimension that divides n (wide unmasked stores, fewer DMA
    # descriptors per tile), keeping at least `sub` rows.
    lane_w = _LANE
    for cand in (1024, 512, 256):
        if n % cand == 0 and (n // cand) >= sub:
            lane_w = cand
            break
    rows = n // lane_w

    # Byte-sized block: ~_TARGET_BLOCK_BYTES per buffer, rounded to the
    # dtype's sublane multiple.
    bytes_per_row = lane_w * itemsize
    max_block_rows = max(sub, (_TARGET_BLOCK_BYTES // bytes_per_row) // sub * sub)
    # At least 2 evenly sized grid steps so both v7x TensorCores get work.
    n_steps = max(2, _cdiv(rows, max_block_rows))
    block_rows = _round_up(_cdiv(rows, n_steps), sub)
    block_rows = min(block_rows, _round_up(rows, 8))
    grid = (_cdiv(rows, block_rows),)

    block_bytes = block_rows * lane_w * itemsize
    vmem_limit = int(min(64 * 1024 * 1024, 4 * block_bytes + 8 * 1024 * 1024))

    x2 = xf.reshape(rows, lane_w)
    out2 = pl.pallas_call(
        _prelu_kernel,
        out_shape=jax.ShapeDtypeStruct((rows, lane_w), dtype),
        grid_spec=pl.GridSpec(
            grid=grid,
            in_specs=[
                pl.BlockSpec(memory_space=pltpu.MemorySpace.SMEM),        # alpha
                pl.BlockSpec((block_rows, lane_w), lambda i: (i, 0)),     # x tile
            ],
            out_specs=pl.BlockSpec((block_rows, lane_w), lambda i: (i, 0)),
        ),
        compiler_params=pltpu.CompilerParams(
            dimension_semantics=("parallel",),
            vmem_limit_bytes=vmem_limit,
        ),
    )(alpha32, x2)
    return out2.reshape(-1)


def complex_prelu(x, alpha):
    """y = x if x >= 0 else alpha * x, elementwise (== split / PReLU / cat)."""
    orig_shape = x.shape
    n = x.size
    alpha_x = jnp.asarray(alpha, x.dtype)

    if n < _SMALL_THRESHOLD:
        # Tiny tensor: a standalone pallas_call is pure launch/DMA overhead;
        # let XLA fuse the elementwise op instead.
        return jnp.where(x >= 0, x, alpha_x * x)

    alpha32 = jnp.asarray(alpha, jnp.float32).reshape(1)
    xf = x.reshape(-1)
    rem = n % _LANE

    if rem == 0:
        # Zero-copy path: reshape -> kernel -> reshape (no pad, no slice).
        return _prelu_pallas_flat(xf, alpha32).reshape(orig_shape)

    # Ragged size: kernel on the lane-aligned prefix, fused jnp.where on the
    # <128-element tail (replaces the old full-tensor jnp.pad + out[:n] passes).
    # TODO(synk): a rank-1 ragged-last-block BlockSpec would also remove the
    # prefix-slice/concat copies; kept the well-trodden 2-D layout here.
    n_main = n - rem
    main_out = _prelu_pallas_flat(xf[:n_main], alpha32)
    tail = xf[n_main:]
    tail_out = jnp.where(tail >= 0, tail, alpha_x * tail)
    return jnp.concatenate([main_out, tail_out]).reshape(orig_shape)


def _reference(x, alpha):
    # Pure-JAX mirror of the exact PyTorch forward (split -> prelu -> cat).
    x_real = x[:, :1, :]
    x_imag = x[:, 1:, :]
    prelu = lambda v: jnp.where(v >= 0, v, alpha * v)
    return jnp.concatenate([prelu(x_real), prelu(x_imag)], axis=1)


if __name__ == "__main__":
    # Deterministic parameter init: nn.PReLU() default weight = 0.25 (scalar).
    alpha = jnp.float32(0.25)

    # Primary test: (B, C, H, W); channel 0 = real, channels 1: = imag.
    # 2*4*16*16 = 2048 elements -> lane-aligned zero-copy Pallas path.
    x = jax.random.normal(jax.random.PRNGKey(0), (2, 4, 16, 16), dtype=jnp.float32)
    y = jax.block_until_ready(complex_prelu(x, alpha))
    y_ref = _reference(x, alpha)
    assert y.shape == x.shape and y.dtype == x.dtype
    assert jnp.allclose(y, y_ref, atol=1e-6, rtol=1e-6)

    # Ragged size (n % 128 != 0): prefix kernel + fused tail, no pad/slice.
    x2 = jax.random.normal(jax.random.PRNGKey(1), (2, 2, 65, 33), dtype=jnp.float32)
    y2 = jax.block_until_ready(complex_prelu(x2, alpha))
    assert jnp.allclose(y2, _reference(x2, alpha), atol=1e-6, rtol=1e-6)

    # bf16: dtype-aware sublane rounding + in-kernel alpha cast.
    x3 = jax.random.normal(jax.random.PRNGKey(2), (2, 4, 16, 16), dtype=jnp.bfloat16)
    y3 = jax.block_until_ready(complex_prelu(x3, alpha))
    assert y3.shape == x3.shape and y3.dtype == jnp.bfloat16
    assert jnp.allclose(y3.astype(jnp.float32),
                        _reference(x3, alpha).astype(jnp.float32),
                        atol=1e-2, rtol=1e-2)

    # Tiny-input fallback path (fused jnp.where, no kernel launch).
    x4 = jax.random.normal(jax.random.PRNGKey(3), (1, 2, 4, 4), dtype=jnp.float32)
    y4 = jax.block_until_ready(complex_prelu(x4, alpha))
    assert jnp.allclose(y4, _reference(x4, alpha), atol=1e-6, rtol=1e-6)

    print("KERNEL_OK")
</pallas_src>

<mosaic_0001>
module attributes {stable_mosaic.version = 11 : i64} {
  func.func @_prelu_kernel(%arg0: i32, %arg1: memref<1xf32, #tpu.memory_space<smem>>, %arg2: memref<8x256xf32, #tpu.memory_space<vmem>>, %arg3: memref<8x256xf32, #tpu.memory_space<vmem>>) attributes {dimension_semantics = [#tpu.dimension_semantics<parallel>], iteration_bounds = array<i64: 1>, scalar_prefetch = 0 : i64, scratch_operands = 0 : i64, tpu.core_type = #tpu.core_type<tc>, window_params = [{transform_indices = @transform_0, window_bounds = array<i64: 1>}, {transform_indices = @transform_1, window_bounds = array<i64: 8, 256>}, {transform_indices = @transform_2, window_bounds = array<i64: 8, 256>}]} {
    %c0 = arith.constant 0 : index
    %c0_0 = arith.constant 0 : index
    %0 = vector.load %arg2[%c0, %c0_0] : memref<8x256xf32, #tpu.memory_space<vmem>>, vector<8x256xf32>
    %c0_1 = arith.constant 0 : index
    %1 = memref.load %arg1[%c0_1] : memref<1xf32, #tpu.memory_space<smem>>
    %cst = arith.constant 0.000000e+00 : f32
    %2 = vector.broadcast %cst : f32 to vector<8x256xf32>
    %3 = arith.cmpf oge, %0, %2 : vector<8x256xf32>
    %4 = vector.broadcast %1 : f32 to vector<8x256xf32>
    %5 = arith.mulf %4, %0 : vector<8x256xf32>
    %6 = arith.select %3, %0, %5 : vector<8x256xi1>, vector<8x256xf32>
    %c0_2 = arith.constant 0 : index
    %c0_3 = arith.constant 0 : index
    %7 = vector.load %arg3[%c0_2, %c0_3] : memref<8x256xf32, #tpu.memory_space<vmem>>, vector<8x256xf32>
    tpu.vector_store %arg3[%c0_2, %c0_3], %6 {strides = array<i32>} : memref<8x256xf32, #tpu.memory_space<vmem>>, vector<8x256xf32>,
    return
  }
  func.func @transform_0(%arg0: i32) -> i32 {
    %c0_i32 = arith.constant 0 : i32
    %c0_i32_0 = arith.constant 0 : i32
    return %c0_i32 : i32
  }
  func.func @transform_1(%arg0: i32) -> (i32, i32) {
    %c0_i32 = arith.constant 0 : i32
    %c0_i32_0 = arith.constant 0 : i32
    return %arg0, %c0_i32 : i32, i32
  }
  func.func @transform_2(%arg0: i32) -> (i32, i32) {
    %c0_i32 = arith.constant 0 : i32
    %c0_i32_0 = arith.constant 0 : i32
    return %arg0, %c0_i32 : i32, i32
  }
}

</mosaic_0001>

<llo_original>
// kernel: tpu_custom_call.1
$region0: #{tpu_custom_call.1}
  #allocation0 [shape = 'u32[]', space=smem, size = 0x4, offset = 0x4, fixed_abs, tag = 'smem constant byte address 0x4 - core index']
  #allocation1 [shape = 'u32[144,128]{1,0:T(1,128)}', space=vmem, size = 0x12000, scoped, tag = 'internal scratch']
  #allocation2 [shape = 'f32[1]{0:T(128)S(6)}', space=smem, size = 0x200, scoped, tag = 'scoped memory for tpu_custom_call.1']
  %s0 = inlined_call_operand.<no memory space> [shape: f32[1], index: 0, kind: input, shape index: {}]
  %s1 = inlined_call_operand.hbm [shape: f32[8,256], index: 1, kind: input, shape index: {}]
  %s2 = inlined_call_operand.hbm [shape: f32[8,256], index: 2, kind: output, shape index: {}]
  %s3 = sld [smem:[#allocation0]]
  $region22: #{tpu_custom_call.1} parent=0
    _
  %s5 = ssub.s32 1, %s3
  %s6 = scalar_select 0, %s5, %s3
  %7 = sst [smem:[#allocation2]] %s0
  $region1: #{tpu_custom_call.1} parent=0
    #allocation3 [shape = 'u8[8192]{0}', space=vmem, size = 0x2000, scoped, tag = 'input window, operand 1, single buffered']
    #allocation4 [shape = 's32[1]{0}', space=sflag, size = 0x4, scoped, tag = 'scoped memory for tpu_custom_call.1']
    #allocation5 [shape = 's32[1]{0}', space=sflag, size = 0x4, scoped, tag = 'scoped memory for tpu_custom_call.1']
    #allocation6 [shape = 'u8[8192]{0}', space=vmem, size = 0x2000, scoped, tag = 'output window, operand 0, single buffered']
    %8 = vsyncpa [#allocation4], 0
    %9 = vsyncpa [#allocation5], 0
    // Predicated region
    $region2: #{tpu_custom_call.1} parent=1 // pred_check
      _
    $region3: #{tpu_custom_call.1} parent=1 // pred_check_branch
      %11 = sbr.rel (0) target = $region5
    $region4: #{tpu_custom_call.1} parent=1 // pred_region
      _
    $region5: #{tpu_custom_call.1} parent=1 // pred_fallthru
      _
    // Predicated region
    $region6: #{tpu_custom_call.1} parent=1 // pred_check
      _
    $region7: #{tpu_custom_call.1} parent=1 // pred_check_branch
      %13 = sbr.rel (0) target = $region9
    $region8: #{tpu_custom_call.1} parent=1 // pred_region
      %s15 = ssub.s32 256, 256
      %16 = vsyncadd [#allocation4], %s15
      %s18 = sshll.u32 [#allocation3], 4
      %s19 = int_to_ptr.vmem [resolvable:$true] %s18
      %21 = dma.hbm_to_vmem [thread:$0]  %s1, 256, %s19, [#allocation4]
    $region9: #{tpu_custom_call.1} parent=1 // pred_fallthru
      _
    // Predicated region
    $region10: #{tpu_custom_call.1} parent=1 // pred_check
      _
    $region11: #{tpu_custom_call.1} parent=1 // pred_check_branch
      %23 = sbr.rel (0) target = $region13
    $region12: #{tpu_custom_call.1} parent=1 // pred_region
      %24 = dma.done [#allocation4], 256
    $region13: #{tpu_custom_call.1} parent=1 // pred_fallthru
      _
    %v25 = vld [vmem:[#allocation3] sm:$0xff]
    %v26 = vld [vmem:[#allocation3 + $0x8] sm:$0xff]
    %s27 = sld [smem:[#allocation2]]
    %vm28 = vcmp.ge.f32.partialorder %v25, 0.0
    %vm29 = vcmp.ge.f32.partialorder %v26, 0.0
    %v30 = vstv %s27
    %v31 = vmul.f32 %v30, %v25
    %v32 = vmul.f32 %v30, %v26
    %v33 = vsel %vm28, %v25, %v31
    %v34 = vsel %vm29, %v26, %v32
    %35 = vst [vmem:[#allocation6] sm:$0xff] %v33
    %36 = vst [vmem:[#allocation6 + $0x8] sm:$0xff] %v34
    // Predicated region
    $region14: #{tpu_custom_call.1} parent=1 // pred_check
      _
    $region15: #{tpu_custom_call.1} parent=1 // pred_check_branch
      %38 = sbr.rel (0) target = $region17
    $region16: #{tpu_custom_call.1} parent=1 // pred_region
      %s40 = ssub.s32 256, 256
      %41 = vsyncadd [#allocation5], %s40
      %s43 = sshll.u32 [#allocation6], 4
      %s44 = int_to_ptr.vmem [resolvable:$true] %s43
      %46 = dma.vmem_to_hbm [thread:$0]  %s44, 256, %s2, [#allocation5]
    $region17: #{tpu_custom_call.1} parent=1 // pred_fallthru
      _
    // Predicated region
    $region18: #{tpu_custom_call.1} parent=1 // pred_check
      _
    $region19: #{tpu_custom_call.1} parent=1 // pred_check_branch
      %48 = sbr.rel (0) target = $region21
    $region20: #{tpu_custom_call.1} parent=1 // pred_region
      %49 = dma.done [#allocation5], 256
    $region21: #{tpu_custom_call.1} parent=1 // pred_fallthru
      _
    %50 = vsyncpa [#allocation4], 1
    %51 = vsyncpa [#allocation5], 1

</llo_original>
